<compile_context>
chip_gen: v7x
topology: tpu7x:2x2x1
jax: 0.10.0
libtpu: 0.0.40
codegen_flags: <defaults>
</compile_context>

<pallas_src>
import functools

import numpy as np
import jax
import jax.numpy as jnp
from jax.experimental import pallas as pl
from jax.experimental.pallas import tpu as pltpu


_LANE = 128                      # groups per block row (lane tile)
_TARGET_BLOCK_BYTES = 1 << 20    # ~1 MiB logical input per block


def _tens_sigmoid_kernel(p_ref, pt_ref, x_ref, o_ref):
    """One (S, t*128) lane-dense block in the natural (contiguous) layout.

    p_ref : (t*128, 128) constant 0/1 projection, P[j, g] = (j // t == g)
    pt_ref: (128, t*128) its transpose
    x_ref : (S, t*128)   input block
    o_ref : (S, t*128)   output block
    """
    x = x_ref[...].astype(jnp.float32)
    x2 = x * x
    # Per-group sum of squares: de-interleave via the 0/1 projection on the
    # otherwise idle MXU (f32 operands, f32 accumulation).
    xx_g = jnp.dot(x2, p_ref[...], preferred_element_type=jnp.float32)     # (S, 128)
    # One rsqrt per group, on a fully dense (S, 128) tile (EUP slot).
    inv_g = jax.lax.rsqrt(1.0 + xx_g)
    # Broadcast each group's normalizer back to its t lanes (pure selection).
    inv = jnp.dot(inv_g, pt_ref[...], preferred_element_type=jnp.float32)  # (S, t*128)
    o_ref[...] = (x * inv).astype(o_ref.dtype)


def _round_up(v, m):
    return (v + m - 1) // m * m


def _choose_block_rows(rows, row_bytes):
    """Pick the block row count: ~1 MiB blocks, >=2 grid steps when possible."""
    target = max(8, (_TARGET_BLOCK_BYTES // row_bytes) // 8 * 8)
    if rows > target:
        return target
    if rows >= 16:
        # Keep at least 2 grid steps so v7x megacore sharding and DMA/compute
        # overlap have work; block stays a multiple of 8 sublanes.
        return max(8, (rows // 2) // 8 * 8)
    return rows


@functools.partial(jax.jit, static_argnames=("inds",))
def tens_sigmoid(x, inds):
    """Pallas implementation of TensSigmoid(inds).forward(x)."""
    orig_shape = x.shape
    assert inds >= 1
    assert len(orig_shape) >= inds
    assert all(d == 3 for d in orig_shape[-inds:]), "trailing dims must be size 3"
    t = 3 ** inds                                   # components per group
    n = 1
    for d in orig_shape[:-inds]:
        n *= d
    L = t * _LANE                                   # lane width: 384 / 1152 / 3456

    # Natural contiguous layout: the t components of a group stay adjacent.
    # (n*t,) -> (rows, t*128) is a pure row-major collapse (no copy).
    flat = x.reshape(n * t)
    n_pad = _round_up(max(n, _LANE), _LANE)
    if n_pad != n:
        # Ragged batch only: one cheap contiguous pad (zeros -> xx=0 -> y=0,
        # sliced off below).  No transposes or strided copies anywhere.
        flat = jnp.pad(flat, (0, (n_pad - n) * t))
    rows = n_pad // _LANE
    arr = flat.reshape(rows, L)

    block_rows = _choose_block_rows(rows, L * x.dtype.itemsize)
    grid = (pl.cdiv(rows, block_rows),)

    # Constant 0/1 projection (and its transpose) for the in-kernel
    # de-interleave; compile-time constants, DMA'd into VMEM once.
    j = np.arange(L) // t
    p = (j[:, None] == np.arange(_LANE)[None, :]).astype(np.float32)   # (L, 128)
    p_t = np.ascontiguousarray(p.T)                                    # (128, L)

    out = pl.pallas_call(
        _tens_sigmoid_kernel,
        out_shape=jax.ShapeDtypeStruct((rows, L), x.dtype),
        grid_spec=pltpu.PrefetchScalarGridSpec(
            num_scalar_prefetch=0,
            grid=grid,
            in_specs=[
                pl.BlockSpec((L, _LANE), lambda i: (0, 0)),       # P   (fetched once)
                pl.BlockSpec((_LANE, L), lambda i: (0, 0)),       # P.T (fetched once)
                pl.BlockSpec((block_rows, L), lambda i: (i, 0)),  # x block
            ],
            out_specs=pl.BlockSpec((block_rows, L), lambda i: (i, 0)),
        ),
        compiler_params=pltpu.CompilerParams(
            # Single batch axis is embarrassingly parallel -> shards across the
            # two TensorCores on v7x; free on v5e/v6e.
            dimension_semantics=("parallel",),
            # Headroom for P/P.T + in/out double buffers + f32 temporaries on
            # all generations (raises v5e's 16 MiB default scoped limit).
            vmem_limit_bytes=32 * 1024 * 1024,
        ),
    )(jnp.asarray(p), jnp.asarray(p_t), arr)

    out_flat = out.reshape(rows * L)
    if n_pad != n:
        out_flat = out_flat[: n * t]
    return out_flat.reshape(orig_shape)


class TensSigmoid:
    """Thin module-style wrapper mirroring the PyTorch nn.Module."""

    def __init__(self, inds):
        self.inds = inds

    def __call__(self, x):
        return tens_sigmoid(x, self.inds)

    # TODO(synk): backward (custom autograd.Function.backward) not implemented;
    # forward-pass only, matching the requested scope.


if __name__ == "__main__":
    cases = [
        # (shape, inds, dtype)
        ((2, 4, 16, 3, 3), 2, jnp.float32),   # n=128: aligned, single block, t=9
        ((40, 128, 3), 1, jnp.float32),       # n=5120: multi-step grid + partial last block
        ((2, 5, 3, 3, 3), 3, jnp.float32),    # n=10: ragged batch (pad path), t=27
        ((2, 4, 16, 3, 3), 2, jnp.bfloat16),  # dtype preservation
    ]

    key = jax.random.PRNGKey(0)
    for shape, inds, dtype in cases:
        key, sub = jax.random.split(key)
        x = jax.random.normal(sub, shape, dtype=jnp.float32).astype(dtype)

        model = TensSigmoid(inds)
        y = jax.block_until_ready(model(x))

        # Pure-JAX reference (same math as the torch forward), in f32.
        xf = x.astype(jnp.float32)
        axes = tuple(range(-inds, 0))
        xx = jnp.sum(xf * xf, axis=axes, keepdims=True)
        y_ref = xf / jnp.sqrt(1.0 + xx)

        assert y.shape == x.shape and y.dtype == x.dtype
        tol = 1e-5 if dtype == jnp.float32 else 2e-2
        assert jnp.allclose(y.astype(jnp.float32), y_ref, atol=tol, rtol=tol), (
            shape, inds, str(dtype))

    print("KERNEL_OK")
</pallas_src>

<mosaic_0001>
module attributes {stable_mosaic.version = 11 : i64} {
  func.func @_tens_sigmoid_kernel(%arg0: i32, %arg1: memref<1152x128xf32, #tpu.memory_space<vmem>>, %arg2: memref<128x1152xf32, #tpu.memory_space<vmem>>, %arg3: memref<1x1152xf32, #tpu.memory_space<vmem>>, %arg4: memref<1x1152xf32, #tpu.memory_space<vmem>>) attributes {dimension_semantics = [#tpu.dimension_semantics<parallel>], iteration_bounds = array<i64: 1>, scalar_prefetch = 0 : i64, scratch_operands = 0 : i64, tpu.core_type = #tpu.core_type<tc>, window_params = [{pipeline_mode = #tpu.pipeline_mode<synchronous>, transform_indices = @transform_0, window_bounds = array<i64: 1152, 128>}, {pipeline_mode = #tpu.pipeline_mode<synchronous>, transform_indices = @transform_1, window_bounds = array<i64: 128, 1152>}, {transform_indices = @transform_2, window_bounds = array<i64: 1, 1152>}, {transform_indices = @transform_3, window_bounds = array<i64: 1, 1152>}]} {
    %c0 = arith.constant 0 : index
    %c0_0 = arith.constant 0 : index
    %0 = vector.load %arg3[%c0, %c0_0] : memref<1x1152xf32, #tpu.memory_space<vmem>>, vector<1x1152xf32>
    %1 = arith.mulf %0, %0 : vector<1x1152xf32>
    %c0_1 = arith.constant 0 : index
    %c0_2 = arith.constant 0 : index
    %2 = vector.load %arg1[%c0_1, %c0_2] : memref<1152x128xf32, #tpu.memory_space<vmem>>, vector<1152x128xf32>
    %cst = arith.constant dense<0.000000e+00> : vector<1x128xf32>
    %3 = tpu.matmul %1, %2, %cst {dimension_numbers = #tpu.dot_dimension_numbers<[1], [0], [0], [1], [0, 0, 1, 1], [], []>} : vector<1x1152xf32>, vector<1152x128xf32>, vector<1x128xf32> -> vector<1x128xf32>
    %cst_3 = arith.constant 1.000000e+00 : f32
    %4 = vector.broadcast %cst_3 : f32 to vector<1x128xf32>
    %5 = arith.addf %4, %3 : vector<1x128xf32>
    %6 = math.rsqrt %5 : vector<1x128xf32>
    %c0_4 = arith.constant 0 : index
    %c0_5 = arith.constant 0 : index
    %7 = vector.load %arg2[%c0_4, %c0_5] : memref<128x1152xf32, #tpu.memory_space<vmem>>, vector<128x1152xf32>
    %cst_6 = arith.constant dense<0.000000e+00> : vector<1x1152xf32>
    %8 = tpu.matmul %6, %7, %cst_6 {dimension_numbers = #tpu.dot_dimension_numbers<[1], [0], [0], [1], [0, 0, 1, 1], [], []>} : vector<1x128xf32>, vector<128x1152xf32>, vector<1x1152xf32> -> vector<1x1152xf32>
    %9 = arith.mulf %0, %8 : vector<1x1152xf32>
    %c0_7 = arith.constant 0 : index
    %c0_8 = arith.constant 0 : index
    %10 = vector.load %arg4[%c0_7, %c0_8] : memref<1x1152xf32, #tpu.memory_space<vmem>>, vector<1x1152xf32>
    tpu.vector_store %arg4[%c0_7, %c0_8], %9 {strides = array<i32>} : memref<1x1152xf32, #tpu.memory_space<vmem>>, vector<1x1152xf32>,
    return
  }
  func.func @transform_0(%arg0: i32) -> (i32, i32) {
    %c0_i32 = arith.constant 0 : i32
    %c0_i32_0 = arith.constant 0 : i32
    %c0_i32_1 = arith.constant 0 : i32
    return %c0_i32, %c0_i32_0 : i32, i32
  }
  func.func @transform_1(%arg0: i32) -> (i32, i32) {
    %c0_i32 = arith.constant 0 : i32
    %c0_i32_0 = arith.constant 0 : i32
    %c0_i32_1 = arith.constant 0 : i32
    return %c0_i32, %c0_i32_0 : i32, i32
  }
  func.func @transform_2(%arg0: i32) -> (i32, i32) {
    %c0_i32 = arith.constant 0 : i32
    %c0_i32_0 = arith.constant 0 : i32
    return %arg0, %c0_i32 : i32, i32
  }
  func.func @transform_3(%arg0: i32) -> (i32, i32) {
    %c0_i32 = arith.constant 0 : i32
    %c0_i32_0 = arith.constant 0 : i32
    return %arg0, %c0_i32 : i32, i32
  }
}

</mosaic_0001>

<llo_original>
// kernel: tens_sigmoid.1
$region0: #{tens_sigmoid.1}
  #allocation0 [shape = 'u32[]', space=smem, size = 0x4, offset = 0x4, fixed_abs, tag = 'smem constant byte address 0x4 - core index']
  #allocation1 [shape = 'u32[144,128]{1,0:T(1,128)}', space=vmem, size = 0x12000, scoped, tag = 'internal scratch']
  %s0 = inlined_call_operand.hbm [shape: f32[1152,128], index: 0, kind: input, shape index: {}]
  %s1 = inlined_call_operand.hbm [shape: f32[128,1152], index: 1, kind: input, shape index: {}]
  %s2 = inlined_call_operand.vmem [shape: f32[1,1152], index: 2, kind: input, shape index: {}]
  %s3 = inlined_call_operand.vmem [shape: f32[1,1152], index: 3, kind: output, shape index: {}]
  %s4 = sld [smem:[#allocation0]]
  $region30: #{tens_sigmoid.1} parent=0
    _
  %s6 = ssub.s32 1, %s4
  %s7 = scalar_select 0, %s6, %s4
  $region1: #{tens_sigmoid.1} parent=0
    #allocation2 [shape = 'u8[589824]{0}', space=vmem, size = 0x90000, scoped, tag = 'input window, operand 0, single buffered']
    #allocation3 [shape = 's32[1]{0}', space=sflag, size = 0x4, scoped, tag = 'scoped memory for tens_sigmoid.1']
    #allocation4 [shape = 'u8[589824]{0}', space=vmem, size = 0x90000, scoped, tag = 'input window, operand 1, single buffered']
    #allocation5 [shape = 's32[1]{0}', space=sflag, size = 0x4, scoped, tag = 'scoped memory for tens_sigmoid.1']
    %8 = vsyncpa [#allocation3], 0
    %9 = vsyncpa [#allocation5], 0
    // Predicated region
    $region2: #{tens_sigmoid.1} parent=1 // pred_check
      _
    $region3: #{tens_sigmoid.1} parent=1 // pred_check_branch
      %11 = sbr.rel (0) target = $region5
    $region4: #{tens_sigmoid.1} parent=1 // pred_region
      %s13 = ssub.s32 18432, 18432
      %14 = vsyncadd [#allocation3], %s13
      %s15 = sshll.u32 [#allocation2], 4
      %s16 = int_to_ptr.vmem [resolvable:$true] %s15
      %21 = dma.hbm_to_vmem [thread:$0]  %s0, 18432, %s16, [#allocation3], 128, 128, 8
    $region5: #{tens_sigmoid.1} parent=1 // pred_fallthru
      _
    // Predicated region
    $region6: #{tens_sigmoid.1} parent=1 // pred_check
      _
    $region7: #{tens_sigmoid.1} parent=1 // pred_check_branch
      %23 = sbr.rel (0) target = $region9
    $region8: #{tens_sigmoid.1} parent=1 // pred_region
      %s25 = ssub.s32 18432, 18432
      %26 = vsyncadd [#allocation5], %s25
      %s27 = sshll.u32 [#allocation4], 4
      %s28 = int_to_ptr.vmem [resolvable:$true] %s27
      %33 = dma.hbm_to_vmem [thread:$0]  %s1, 18432, %s28, [#allocation5], 1152, 1152, 72
    $region9: #{tens_sigmoid.1} parent=1 // pred_fallthru
      _
    // Predicated region
    $region10: #{tens_sigmoid.1} parent=1 // pred_check
      _
    $region11: #{tens_sigmoid.1} parent=1 // pred_check_branch
      %35 = sbr.rel (0) target = $region13
    $region12: #{tens_sigmoid.1} parent=1 // pred_region
      _
    $region13: #{tens_sigmoid.1} parent=1 // pred_fallthru
      _
    // Predicated region
    $region14: #{tens_sigmoid.1} parent=1 // pred_check
      _
    $region15: #{tens_sigmoid.1} parent=1 // pred_check_branch
      %37 = sbr.rel (0) target = $region17
    $region16: #{tens_sigmoid.1} parent=1 // pred_region
      %38 = dma.done [#allocation3], 18432
    $region17: #{tens_sigmoid.1} parent=1 // pred_fallthru
      _
    // Predicated region
    $region18: #{tens_sigmoid.1} parent=1 // pred_check
      _
    $region19: #{tens_sigmoid.1} parent=1 // pred_check_branch
      %40 = sbr.rel (0) target = $region21
    $region20: #{tens_sigmoid.1} parent=1 // pred_region
      %41 = dma.done [#allocation5], 18432
    $region21: #{tens_sigmoid.1} parent=1 // pred_fallthru
      _
    %v42 = vld [vmem:[%s2] sm:$0xff]
    %v43 = vld [vmem:[%s2 + $0x8] sm:$0x1]
    %v44 = vmul.f32 %v42, %v42
    %v45 = vmul.f32 %v43, %v43
    %v46 = vld [vmem:[#allocation2] sm:$0xff]
    %v47 = vld [vmem:[#allocation2 + $0x8] sm:$0xff]
    %v48 = vld [vmem:[#allocation2 + $0x10] sm:$0xff]
    %v49 = vld [vmem:[#allocation2 + $0x18] sm:$0xff]
    %v50 = vld [vmem:[#allocation2 + $0x20] sm:$0xff]
    %v51 = vld [vmem:[#allocation2 + $0x28] sm:$0xff]
    %v52 = vld [vmem:[#allocation2 + $0x30] sm:$0xff]
    %v53 = vld [vmem:[#allocation2 + $0x38] sm:$0xff]
    %v54 = vld [vmem:[#allocation2 + $0x40] sm:$0xff]
    %v55 = vld [vmem:[#allocation2 + $0x48] sm:$0xff]
    %v56 = vld [vmem:[#allocation2 + $0x50] sm:$0xff]
    %v57 = vld [vmem:[#allocation2 + $0x58] sm:$0xff]
    %v58 = vld [vmem:[#allocation2 + $0x60] sm:$0xff]
    %v59 = vld [vmem:[#allocation2 + $0x68] sm:$0xff]
    %v60 = vld [vmem:[#allocation2 + $0x70] sm:$0xff]
    %v61 = vld [vmem:[#allocation2 + $0x78] sm:$0xff]
    %v62 = vld [vmem:[#allocation2 + $0x80] sm:$0xff]
    %v63 = vld [vmem:[#allocation2 + $0x88] sm:$0xff]
    %v64 = vld [vmem:[#allocation2 + $0x90] sm:$0xff]
    %v65 = vld [vmem:[#allocation2 + $0x98] sm:$0xff]
    %v66 = vld [vmem:[#allocation2 + $0xa0] sm:$0xff]
    %v67 = vld [vmem:[#allocation2 + $0xa8] sm:$0xff]
    %v68 = vld [vmem:[#allocation2 + $0xb0] sm:$0xff]
    %v69 = vld [vmem:[#allocation2 + $0xb8] sm:$0xff]
    %v70 = vld [vmem:[#allocation2 + $0xc0] sm:$0xff]
    %v71 = vld [vmem:[#allocation2 + $0xc8] sm:$0xff]
    %v72 = vld [vmem:[#allocation2 + $0xd0] sm:$0xff]
    %v73 = vld [vmem:[#allocation2 + $0xd8] sm:$0xff]
    %v74 = vld [vmem:[#allocation2 + $0xe0] sm:$0xff]
    %v75 = vld [vmem:[#allocation2 + $0xe8] sm:$0xff]
    %v76 = vld [vmem:[#allocation2 + $0xf0] sm:$0xff]
    %v77 = vld [vmem:[#allocation2 + $0xf8] sm:$0xff]
    %v78 = vld [vmem:[#allocation2 + $0x100] sm:$0xff]
    %v79 = vld [vmem:[#allocation2 + $0x108] sm:$0xff]
    %v80 = vld [vmem:[#allocation2 + $0x110] sm:$0xff]
    %v81 = vld [vmem:[#allocation2 + $0x118] sm:$0xff]
    %v82 = vld [vmem:[#allocation2 + $0x120] sm:$0xff]
    %v83 = vld [vmem:[#allocation2 + $0x128] sm:$0xff]
    %v84 = vld [vmem:[#allocation2 + $0x130] sm:$0xff]
    %v85 = vld [vmem:[#allocation2 + $0x138] sm:$0xff]
    %v86 = vld [vmem:[#allocation2 + $0x140] sm:$0xff]
    %v87 = vld [vmem:[#allocation2 + $0x148] sm:$0xff]
    %v88 = vld [vmem:[#allocation2 + $0x150] sm:$0xff]
    %v89 = vld [vmem:[#allocation2 + $0x158] sm:$0xff]
    %v90 = vld [vmem:[#allocation2 + $0x160] sm:$0xff]
    %v91 = vld [vmem:[#allocation2 + $0x168] sm:$0xff]
    %v92 = vld [vmem:[#allocation2 + $0x170] sm:$0xff]
    %v93 = vld [vmem:[#allocation2 + $0x178] sm:$0xff]
    %v94 = vld [vmem:[#allocation2 + $0x180] sm:$0xff]
    %v95 = vld [vmem:[#allocation2 + $0x188] sm:$0xff]
    %v96 = vld [vmem:[#allocation2 + $0x190] sm:$0xff]
    %v97 = vld [vmem:[#allocation2 + $0x198] sm:$0xff]
    %v98 = vld [vmem:[#allocation2 + $0x1a0] sm:$0xff]
    %v99 = vld [vmem:[#allocation2 + $0x1a8] sm:$0xff]
    %v100 = vld [vmem:[#allocation2 + $0x1b0] sm:$0xff]
    %v101 = vld [vmem:[#allocation2 + $0x1b8] sm:$0xff]
    %v102 = vld [vmem:[#allocation2 + $0x1c0] sm:$0xff]
    %v103 = vld [vmem:[#allocation2 + $0x1c8] sm:$0xff]
    %v104 = vld [vmem:[#allocation2 + $0x1d0] sm:$0xff]
    %v105 = vld [vmem:[#allocation2 + $0x1d8] sm:$0xff]
    %v106 = vld [vmem:[#allocation2 + $0x1e0] sm:$0xff]
    %v107 = vld [vmem:[#allocation2 + $0x1e8] sm:$0xff]
    %v108 = vld [vmem:[#allocation2 + $0x1f0] sm:$0xff]
    %v109 = vld [vmem:[#allocation2 + $0x1f8] sm:$0xff]
    %v110 = vld [vmem:[#allocation2 + $0x200] sm:$0xff]
    %v111 = vld [vmem:[#allocation2 + $0x208] sm:$0xff]
    %v112 = vld [vmem:[#allocation2 + $0x210] sm:$0xff]
    %v113 = vld [vmem:[#allocation2 + $0x218] sm:$0xff]
    %v114 = vld [vmem:[#allocation2 + $0x220] sm:$0xff]
    %v115 = vld [vmem:[#allocation2 + $0x228] sm:$0xff]
    %v116 = vld [vmem:[#allocation2 + $0x230] sm:$0xff]
    %v117 = vld [vmem:[#allocation2 + $0x238] sm:$0xff]
    %v118 = vld [vmem:[#allocation2 + $0x240] sm:$0xff]
    %v119 = vld [vmem:[#allocation2 + $0x248] sm:$0xff]
    %v120 = vld [vmem:[#allocation2 + $0x250] sm:$0xff]
    %v121 = vld [vmem:[#allocation2 + $0x258] sm:$0xff]
    %v122 = vld [vmem:[#allocation2 + $0x260] sm:$0xff]
    %v123 = vld [vmem:[#allocation2 + $0x268] sm:$0xff]
    %v124 = vld [vmem:[#allocation2 + $0x270] sm:$0xff]
    %v125 = vld [vmem:[#allocation2 + $0x278] sm:$0xff]
    %v126 = vld [vmem:[#allocation2 + $0x280] sm:$0xff]
    %v127 = vld [vmem:[#allocation2 + $0x288] sm:$0xff]
    %v128 = vld [vmem:[#allocation2 + $0x290] sm:$0xff]
    %v129 = vld [vmem:[#allocation2 + $0x298] sm:$0xff]
    %v130 = vld [vmem:[#allocation2 + $0x2a0] sm:$0xff]
    %v131 = vld [vmem:[#allocation2 + $0x2a8] sm:$0xff]
    %v132 = vld [vmem:[#allocation2 + $0x2b0] sm:$0xff]
    %v133 = vld [vmem:[#allocation2 + $0x2b8] sm:$0xff]
    %v134 = vld [vmem:[#allocation2 + $0x2c0] sm:$0xff]
    %v135 = vld [vmem:[#allocation2 + $0x2c8] sm:$0xff]
    %v136 = vld [vmem:[#allocation2 + $0x2d0] sm:$0xff]
    %v137 = vld [vmem:[#allocation2 + $0x2d8] sm:$0xff]
    %v138 = vld [vmem:[#allocation2 + $0x2e0] sm:$0xff]
    %v139 = vld [vmem:[#allocation2 + $0x2e8] sm:$0xff]
    %v140 = vld [vmem:[#allocation2 + $0x2f0] sm:$0xff]
    %v141 = vld [vmem:[#allocation2 + $0x2f8] sm:$0xff]
    %v142 = vld [vmem:[#allocation2 + $0x300] sm:$0xff]
    %v143 = vld [vmem:[#allocation2 + $0x308] sm:$0xff]
    %v144 = vld [vmem:[#allocation2 + $0x310] sm:$0xff]
    %v145 = vld [vmem:[#allocation2 + $0x318] sm:$0xff]
    %v146 = vld [vmem:[#allocation2 + $0x320] sm:$0xff]
    %v147 = vld [vmem:[#allocation2 + $0x328] sm:$0xff]
    %v148 = vld [vmem:[#allocation2 + $0x330] sm:$0xff]
    %v149 = vld [vmem:[#allocation2 + $0x338] sm:$0xff]
    %v150 = vld [vmem:[#allocation2 + $0x340] sm:$0xff]
    %v151 = vld [vmem:[#allocation2 + $0x348] sm:$0xff]
    %v152 = vld [vmem:[#allocation2 + $0x350] sm:$0xff]
    %v153 = vld [vmem:[#allocation2 + $0x358] sm:$0xff]
    %v154 = vld [vmem:[#allocation2 + $0x360] sm:$0xff]
    %v155 = vld [vmem:[#allocation2 + $0x368] sm:$0xff]
    %v156 = vld [vmem:[#allocation2 + $0x370] sm:$0xff]
    %v157 = vld [vmem:[#allocation2 + $0x378] sm:$0xff]
    %v158 = vld [vmem:[#allocation2 + $0x380] sm:$0xff]
    %v159 = vld [vmem:[#allocation2 + $0x388] sm:$0xff]
    %v160 = vld [vmem:[#allocation2 + $0x390] sm:$0xff]
    %v161 = vld [vmem:[#allocation2 + $0x398] sm:$0xff]
    %v162 = vld [vmem:[#allocation2 + $0x3a0] sm:$0xff]
    %v163 = vld [vmem:[#allocation2 + $0x3a8] sm:$0xff]
    %v164 = vld [vmem:[#allocation2 + $0x3b0] sm:$0xff]
    %v165 = vld [vmem:[#allocation2 + $0x3b8] sm:$0xff]
    %v166 = vld [vmem:[#allocation2 + $0x3c0] sm:$0xff]
    %v167 = vld [vmem:[#allocation2 + $0x3c8] sm:$0xff]
    %v168 = vld [vmem:[#allocation2 + $0x3d0] sm:$0xff]
    %v169 = vld [vmem:[#allocation2 + $0x3d8] sm:$0xff]
    %v170 = vld [vmem:[#allocation2 + $0x3e0] sm:$0xff]
    %v171 = vld [vmem:[#allocation2 + $0x3e8] sm:$0xff]
    %v172 = vld [vmem:[#allocation2 + $0x3f0] sm:$0xff]
    %v173 = vld [vmem:[#allocation2 + $0x3f8] sm:$0xff]
    %v174 = vld [vmem:[#allocation2 + $0x400] sm:$0xff]
    %v175 = vld [vmem:[#allocation2 + $0x408] sm:$0xff]
    %v176 = vld [vmem:[#allocation2 + $0x410] sm:$0xff]
    %v177 = vld [vmem:[#allocation2 + $0x418] sm:$0xff]
    %v178 = vld [vmem:[#allocation2 + $0x420] sm:$0xff]
    %v179 = vld [vmem:[#allocation2 + $0x428] sm:$0xff]
    %v180 = vld [vmem:[#allocation2 + $0x430] sm:$0xff]
    %v181 = vld [vmem:[#allocation2 + $0x438] sm:$0xff]
    %v182 = vld [vmem:[#allocation2 + $0x440] sm:$0xff]
    %v183 = vld [vmem:[#allocation2 + $0x448] sm:$0xff]
    %v184 = vld [vmem:[#allocation2 + $0x450] sm:$0xff]
    %v185 = vld [vmem:[#allocation2 + $0x458] sm:$0xff]
    %v186 = vld [vmem:[#allocation2 + $0x460] sm:$0xff]
    %v187 = vld [vmem:[#allocation2 + $0x468] sm:$0xff]
    %v188 = vld [vmem:[#allocation2 + $0x470] sm:$0xff]
    %v189 = vld [vmem:[#allocation2 + $0x478] sm:$0xff]
    %v192 = vlaneseq
    %v193 = vshrl.u32 %v192, 7
    %v194 = vsub.s32 0, %v193
    %v195 = vrot.slane %v44, %v194
    %v196 = vlaneseq
    %v197 = vshrl.u32 %v196, 7
    %v198 = vsub.s32 1, %v197
    %v199 = vrot.slane %v44, %v198
    %v200 = vlaneseq
    %v201 = vshrl.u32 %v200, 7
    %v202 = vsub.s32 2, %v201
    %v203 = vrot.slane %v44, %v202
    %v204 = vlaneseq
    %v205 = vshrl.u32 %v204, 7
    %v206 = vsub.s32 3, %v205
    %v207 = vrot.slane %v44, %v206
    %v208 = vlaneseq
    %v209 = vshrl.u32 %v208, 7
    %v210 = vsub.s32 4, %v209
    %v211 = vrot.slane %v44, %v210
    %v212 = vlaneseq
    %v213 = vshrl.u32 %v212, 7
    %v214 = vsub.s32 5, %v213
    %v215 = vrot.slane %v44, %v214
    %v216 = vlaneseq
    %v217 = vshrl.u32 %v216, 7
    %v218 = vsub.s32 6, %v217
    %v219 = vrot.slane %v44, %v218
    %v220 = vlaneseq
    %v221 = vshrl.u32 %v220, 7
    %v222 = vsub.s32 7, %v221
    %v223 = vrot.slane %v44, %v222
    %v224 = vlaneseq
    %v225 = vshrl.u32 %v224, 7
    %v226 = vsub.s32 0, %v225
    %v227 = vrot.slane %v45, %v226
    %237 = vmatprep.subr.mxu0 0.0
    %238 = vmatpush1.msra.mxu0 %v46
    %239 = vmatprep.subr.mxu0 0.0
    %240 = vmatpush1.msra.mxu0 %v47
    %241 = vmatprep.subr.mxu0 0.0
    %242 = vmatpush1.msra.mxu0 %v48
    %243 = vmatprep.subr.mxu0 0.0
    %244 = vmatpush1.msra.mxu0 %v49
    %245 = vmatprep.subr.mxu0 0.0
    %246 = vmatpush1.msra.mxu0 %v50
    %247 = vmatprep.subr.mxu0 0.0
    %248 = vmatpush1.msra.mxu0 %v51
    %249 = vmatprep.subr.mxu0 0.0
    %250 = vmatpush1.msra.mxu0 %v52
    %251 = vmatprep.subr.mxu0 0.0
    %252 = vmatpush1.msra.mxu0 %v53
    %253 = vmatprep.subr.mxu0 0.0
    %254 = vmatpush1.msra.mxu0 %v54
    %255 = vmatprep.subr.mxu0 0.0
    %256 = vmatpush1.msra.mxu0 %v55
    %257 = vmatprep.subr.mxu0 0.0
    %258 = vmatpush1.msra.mxu0 %v56
    %259 = vmatprep.subr.mxu0 0.0
    %260 = vmatpush1.msra.mxu0 %v57
    %261 = vmatprep.subr.mxu0 0.0
    %262 = vmatpush1.msra.mxu0 %v58
    %263 = vmatprep.subr.mxu0 0.0
    %264 = vmatpush1.msra.mxu0 %v59
    %265 = vmatprep.subr.mxu0 0.0
    %266 = vmatpush1.msra.mxu0 %v60
    %267 = vmatprep.subr.mxu0 0.0
    %268 = vmatpush1.msra.mxu0 %v61
    %269 = vmatprep.subr.mxu0 0.0
    %270 = vmatpush1.msra.mxu0 %v62
    %271 = vmatprep.subr.mxu0 0.0
    %272 = vmatpush1.msra.mxu0 %v63
    %273 = vmatprep.subr.mxu0 0.0
    %274 = vmatpush1.msra.mxu0 %v64
    %275 = vmatprep.subr.mxu0 0.0
    %276 = vmatpush1.msra.mxu0 %v65
    %277 = vmatprep.subr.mxu0 0.0
    %278 = vmatpush1.msra.mxu0 %v66
    %279 = vmatprep.subr.mxu0 0.0
    %280 = vmatpush1.msra.mxu0 %v67
    %281 = vmatprep.subr.mxu0 0.0
    %282 = vmatpush1.msra.mxu0 %v68
    %283 = vmatprep.subr.mxu0 0.0
    %284 = vmatpush1.msra.mxu0 %v69
    %285 = vmatprep.subr.mxu0 0.0
    %286 = vmatpush1.msra.mxu0 %v70
    %287 = vmatprep.subr.mxu0 0.0
    %288 = vmatpush1.msra.mxu0 %v71
    %289 = vmatprep.subr.mxu0 0.0
    %290 = vmatpush1.msra.mxu0 %v72
    %291 = vmatprep.subr.mxu0 0.0
    %292 = vmatpush1.msra.mxu0 %v73
    %293 = vmatprep.subr.mxu0 0.0
    %294 = vmatpush1.msra.mxu0 %v74
    %295 = vmatprep.subr.mxu0 0.0
    %296 = vmatpush1.msra.mxu0 %v75
    %297 = vmatprep.subr.mxu0 0.0
    %298 = vmatpush1.msra.mxu0 %v76
    %299 = vmatprep.subr.mxu0 0.0
    %300 = vmatpush1.msra.mxu0 %v77
    %301 = vmatprep.mubr.f32.mxu0 %v199
    %302 = vmatmul.mubr.f32.gmra.mrb[0].mxu0 %v195
    %v303 = vpop.f32.mrb[0].mxu0
    %v304 = vadd.f32 1.0, %v303
    %v305 = vpop.f32.mrb[0].mxu0
    %306 = vdwg.mxu0
    %307 = vmatprep.subr.mxu0 0.0
    %308 = vmatpush1.msra.mxu0 %v78
    %309 = vmatprep.subr.mxu0 0.0
    %310 = vmatpush1.msra.mxu0 %v79
    %311 = vmatprep.subr.mxu0 0.0
    %312 = vmatpush1.msra.mxu0 %v80
    %313 = vmatprep.subr.mxu0 0.0
    %314 = vmatpush1.msra.mxu0 %v81
    %315 = vmatprep.subr.mxu0 0.0
    %316 = vmatpush1.msra.mxu0 %v82
    %317 = vmatprep.subr.mxu0 0.0
    %318 = vmatpush1.msra.mxu0 %v83
    %319 = vmatprep.subr.mxu0 0.0
    %320 = vmatpush1.msra.mxu0 %v84
    %321 = vmatprep.subr.mxu0 0.0
    %322 = vmatpush1.msra.mxu0 %v85
    %323 = vmatprep.subr.mxu0 0.0
    %324 = vmatpush1.msra.mxu0 %v86
    %325 = vmatprep.subr.mxu0 0.0
    %326 = vmatpush1.msra.mxu0 %v87
    %327 = vmatprep.subr.mxu0 0.0
    %328 = vmatpush1.msra.mxu0 %v88
    %329 = vmatprep.subr.mxu0 0.0
    %330 = vmatpush1.msra.mxu0 %v89
    %331 = vmatprep.subr.mxu0 0.0
    %332 = vmatpush1.msra.mxu0 %v90
    %333 = vmatprep.subr.mxu0 0.0
    %334 = vmatpush1.msra.mxu0 %v91
    %335 = vmatprep.subr.mxu0 0.0
    %336 = vmatpush1.msra.mxu0 %v92
    %337 = vmatprep.subr.mxu0 0.0
    %338 = vmatpush1.msra.mxu0 %v93
    %339 = vmatprep.subr.mxu0 0.0
    %340 = vmatpush1.msra.mxu0 %v94
    %341 = vmatprep.subr.mxu0 0.0
    %342 = vmatpush1.msra.mxu0 %v95
    %343 = vmatprep.subr.mxu0 0.0
    %344 = vmatpush1.msra.mxu0 %v96
    %345 = vmatprep.subr.mxu0 0.0
    %346 = vmatpush1.msra.mxu0 %v97
    %347 = vmatprep.subr.mxu0 0.0
    %348 = vmatpush1.msra.mxu0 %v98
    %349 = vmatprep.subr.mxu0 0.0
    %350 = vmatpush1.msra.mxu0 %v99
    %351 = vmatprep.subr.mxu0 0.0
    %352 = vmatpush1.msra.mxu0 %v100
    %353 = vmatprep.subr.mxu0 0.0
    %354 = vmatpush1.msra.mxu0 %v101
    %355 = vmatprep.subr.mxu0 0.0
    %356 = vmatpush1.msra.mxu0 %v102
    %357 = vmatprep.subr.mxu0 0.0
    %358 = vmatpush1.msra.mxu0 %v103
    %359 = vmatprep.subr.mxu0 0.0
    %360 = vmatpush1.msra.mxu0 %v104
    %361 = vmatprep.subr.mxu0 0.0
    %362 = vmatpush1.msra.mxu0 %v105
    %363 = vmatprep.subr.mxu0 0.0
    %364 = vmatpush1.msra.mxu0 %v106
    %365 = vmatprep.subr.mxu0 0.0
    %366 = vmatpush1.msra.mxu0 %v107
    %367 = vmatprep.subr.mxu0 0.0
    %368 = vmatpush1.msra.mxu0 %v108
    %369 = vmatprep.subr.mxu0 0.0
    %370 = vmatpush1.msra.mxu0 %v109
    %371 = vmatprep.mubr.f32.mxu0 %v207
    %372 = vmatmul.mubr.f32.gmra.mrb[0].mxu0 %v203
    %v373 = vpop.f32.mrb[0].mxu0
    %v374 = vadd.f32 %v304, %v373
    %v375 = vpop.f32.mrb[0].mxu0
    %376 = vdwg.mxu0
    %377 = vmatprep.subr.mxu0 0.0
    %378 = vmatpush1.msra.mxu0 %v110
    %379 = vmatprep.subr.mxu0 0.0
    %380 = vmatpush1.msra.mxu0 %v111
    %381 = vmatprep.subr.mxu0 0.0
    %382 = vmatpush1.msra.mxu0 %v112
    %383 = vmatprep.subr.mxu0 0.0
    %384 = vmatpush1.msra.mxu0 %v113
    %385 = vmatprep.subr.mxu0 0.0
    %386 = vmatpush1.msra.mxu0 %v114
    %387 = vmatprep.subr.mxu0 0.0
    %388 = vmatpush1.msra.mxu0 %v115
    %389 = vmatprep.subr.mxu0 0.0
    %390 = vmatpush1.msra.mxu0 %v116
    %391 = vmatprep.subr.mxu0 0.0
    %392 = vmatpush1.msra.mxu0 %v117
    %393 = vmatprep.subr.mxu0 0.0
    %394 = vmatpush1.msra.mxu0 %v118
    %395 = vmatprep.subr.mxu0 0.0
    %396 = vmatpush1.msra.mxu0 %v119
    %397 = vmatprep.subr.mxu0 0.0
    %398 = vmatpush1.msra.mxu0 %v120
    %399 = vmatprep.subr.mxu0 0.0
    %400 = vmatpush1.msra.mxu0 %v121
    %401 = vmatprep.subr.mxu0 0.0
    %402 = vmatpush1.msra.mxu0 %v122
    %403 = vmatprep.subr.mxu0 0.0
    %404 = vmatpush1.msra.mxu0 %v123
    %405 = vmatprep.subr.mxu0 0.0
    %406 = vmatpush1.msra.mxu0 %v124
    %407 = vmatprep.subr.mxu0 0.0
    %408 = vmatpush1.msra.mxu0 %v125
    %409 = vmatprep.subr.mxu0 0.0
    %410 = vmatpush1.msra.mxu0 %v126
    %411 = vmatprep.subr.mxu0 0.0
    %412 = vmatpush1.msra.mxu0 %v127
    %413 = vmatprep.subr.mxu0 0.0
    %414 = vmatpush1.msra.mxu0 %v128
    %415 = vmatprep.subr.mxu0 0.0
    %416 = vmatpush1.msra.mxu0 %v129
    %417 = vmatprep.subr.mxu0 0.0
    %418 = vmatpush1.msra.mxu0 %v130
    %419 = vmatprep.subr.mxu0 0.0
    %420 = vmatpush1.msra.mxu0 %v131
    %421 = vmatprep.subr.mxu0 0.0
    %422 = vmatpush1.msra.mxu0 %v132
    %423 = vmatprep.subr.mxu0 0.0
    %424 = vmatpush1.msra.mxu0 %v133
    %425 = vmatprep.subr.mxu0 0.0
    %426 = vmatpush1.msra.mxu0 %v134
    %427 = vmatprep.subr.mxu0 0.0
    %428 = vmatpush1.msra.mxu0 %v135
    %429 = vmatprep.subr.mxu0 0.0
    %430 = vmatpush1.msra.mxu0 %v136
    %431 = vmatprep.subr.mxu0 0.0
    %432 = vmatpush1.msra.mxu0 %v137
    %433 = vmatprep.subr.mxu0 0.0
    %434 = vmatpush1.msra.mxu0 %v138
    %435 = vmatprep.subr.mxu0 0.0
    %436 = vmatpush1.msra.mxu0 %v139
    %437 = vmatprep.subr.mxu0 0.0
    %438 = vmatpush1.msra.mxu0 %v140
    %439 = vmatprep.subr.mxu0 0.0
    %440 = vmatpush1.msra.mxu0 %v141
    %441 = vmatprep.mubr.f32.mxu0 %v215
    %442 = vmatmul.mubr.f32.gmra.mrb[0].mxu0 %v211
    %v443 = vpop.f32.mrb[0].mxu0
    %v444 = vadd.f32 %v374, %v443
    %v445 = vpop.f32.mrb[0].mxu0
    %446 = vdwg.mxu0
    %447 = vmatprep.subr.mxu0 0.0
    %448 = vmatpush1.msra.mxu0 %v142
    %449 = vmatprep.subr.mxu0 0.0
    %450 = vmatpush1.msra.mxu0 %v143
    %451 = vmatprep.subr.mxu0 0.0
    %452 = vmatpush1.msra.mxu0 %v144
    %453 = vmatprep.subr.mxu0 0.0
    %454 = vmatpush1.msra.mxu0 %v145
    %455 = vmatprep.subr.mxu0 0.0
    %456 = vmatpush1.msra.mxu0 %v146
    %457 = vmatprep.subr.mxu0 0.0
    %458 = vmatpush1.msra.mxu0 %v147
    %459 = vmatprep.subr.mxu0 0.0
    %460 = vmatpush1.msra.mxu0 %v148
    %461 = vmatprep.subr.mxu0 0.0
    %462 = vmatpush1.msra.mxu0 %v149
    %463 = vmatprep.subr.mxu0 0.0
    %464 = vmatpush1.msra.mxu0 %v150
    %465 = vmatprep.subr.mxu0 0.0
    %466 = vmatpush1.msra.mxu0 %v151
    %467 = vmatprep.subr.mxu0 0.0
    %468 = vmatpush1.msra.mxu0 %v152
    %469 = vmatprep.subr.mxu0 0.0
    %470 = vmatpush1.msra.mxu0 %v153
    %471 = vmatprep.subr.mxu0 0.0
    %472 = vmatpush1.msra.mxu0 %v154
    %473 = vmatprep.subr.mxu0 0.0
    %474 = vmatpush1.msra.mxu0 %v155
    %475 = vmatprep.subr.mxu0 0.0
    %476 = vmatpush1.msra.mxu0 %v156
    %477 = vmatprep.subr.mxu0 0.0
    %478 = vmatpush1.msra.mxu0 %v157
    %479 = vmatprep.subr.mxu0 0.0
    %480 = vmatpush1.msra.mxu0 %v158
    %481 = vmatprep.subr.mxu0 0.0
    %482 = vmatpush1.msra.mxu0 %v159
    %483 = vmatprep.subr.mxu0 0.0
    %484 = vmatpush1.msra.mxu0 %v160
    %485 = vmatprep.subr.mxu0 0.0
    %486 = vmatpush1.msra.mxu0 %v161
    %487 = vmatprep.subr.mxu0 0.0
    %488 = vmatpush1.msra.mxu0 %v162
    %489 = vmatprep.subr.mxu0 0.0
    %490 = vmatpush1.msra.mxu0 %v163
    %491 = vmatprep.subr.mxu0 0.0
    %492 = vmatpush1.msra.mxu0 %v164
    %493 = vmatprep.subr.mxu0 0.0
    %494 = vmatpush1.msra.mxu0 %v165
    %495 = vmatprep.subr.mxu0 0.0
    %496 = vmatpush1.msra.mxu0 %v166
    %497 = vmatprep.subr.mxu0 0.0
    %498 = vmatpush1.msra.mxu0 %v167
    %499 = vmatprep.subr.mxu0 0.0
    %500 = vmatpush1.msra.mxu0 %v168
    %501 = vmatprep.subr.mxu0 0.0
    %502 = vmatpush1.msra.mxu0 %v169
    %503 = vmatprep.subr.mxu0 0.0
    %504 = vmatpush1.msra.mxu0 %v170
    %505 = vmatprep.subr.mxu0 0.0
    %506 = vmatpush1.msra.mxu0 %v171
    %507 = vmatprep.subr.mxu0 0.0
    %508 = vmatpush1.msra.mxu0 %v172
    %509 = vmatprep.subr.mxu0 0.0
    %510 = vmatpush1.msra.mxu0 %v173
    %511 = vmatprep.mubr.f32.mxu0 %v223
    %512 = vmatmul.mubr.f32.gmra.mrb[0].mxu0 %v219
    %v513 = vpop.f32.mrb[0].mxu0
    %v514 = vadd.f32 %v444, %v513
    %v515 = vpop.f32.mrb[0].mxu0
    %516 = vdwg.mxu0
    %517 = vmatprep.subr.mxu0 0.0
    %518 = vmatpush1.msra.mxu0 %v174
    %519 = vmatprep.subr.mxu0 0.0
    %520 = vmatpush1.msra.mxu0 %v175
    %521 = vmatprep.subr.mxu0 0.0
    %522 = vmatpush1.msra.mxu0 %v176
    %523 = vmatprep.subr.mxu0 0.0
    %524 = vmatpush1.msra.mxu0 %v177
    %525 = vmatprep.subr.mxu0 0.0
    %526 = vmatpush1.msra.mxu0 %v178
    %527 = vmatprep.subr.mxu0 0.0
    %528 = vmatpush1.msra.mxu0 %v179
    %529 = vmatprep.subr.mxu0 0.0
    %530 = vmatpush1.msra.mxu0 %v180
    %531 = vmatprep.subr.mxu0 0.0
    %532 = vmatpush1.msra.mxu0 %v181
    %533 = vmatprep.subr.mxu0 0.0
    %534 = vmatpush1.msra.mxu0 %v182
    %535 = vmatprep.subr.mxu0 0.0
    %536 = vmatpush1.msra.mxu0 %v183
    %537 = vmatprep.subr.mxu0 0.0
    %538 = vmatpush1.msra.mxu0 %v184
    %539 = vmatprep.subr.mxu0 0.0
    %540 = vmatpush1.msra.mxu0 %v185
    %541 = vmatprep.subr.mxu0 0.0
    %542 = vmatpush1.msra.mxu0 %v186
    %543 = vmatprep.subr.mxu0 0.0
    %544 = vmatpush1.msra.mxu0 %v187
    %545 = vmatprep.subr.mxu0 0.0
    %546 = vmatpush1.msra.mxu0 %v188
    %547 = vmatprep.subr.mxu0 0.0
    %548 = vmatpush1.msra.mxu0 %v189
    %549 = vmatprep.subr.mxu0 0.0
    %550 = vmatpush1.msra.mxu0 0.0
    %551 = vmatprep.subr.mxu0 0.0
    %552 = vmatpush1.msra.mxu0 0.0
    %553 = vmatprep.subr.mxu0 0.0
    %554 = vmatpush1.msra.mxu0 0.0
    %555 = vmatprep.subr.mxu0 0.0
    %556 = vmatpush1.msra.mxu0 0.0
    %557 = vmatprep.subr.mxu0 0.0
    %558 = vmatpush1.msra.mxu0 0.0
    %559 = vmatprep.subr.mxu0 0.0
    %560 = vmatpush1.msra.mxu0 0.0
    %561 = vmatprep.subr.mxu0 0.0
    %562 = vmatpush1.msra.mxu0 0.0
    %563 = vmatprep.subr.mxu0 0.0
    %564 = vmatpush1.msra.mxu0 0.0
    %565 = vmatprep.subr.mxu0 0.0
    %566 = vmatpush1.msra.mxu0 0.0
    %567 = vmatprep.subr.mxu0 0.0
    %568 = vmatpush1.msra.mxu0 0.0
    %569 = vmatprep.subr.mxu0 0.0
    %570 = vmatpush1.msra.mxu0 0.0
    %571 = vmatprep.subr.mxu0 0.0
    %572 = vmatpush1.msra.mxu0 0.0
    %573 = vmatprep.subr.mxu0 0.0
    %574 = vmatpush1.msra.mxu0 0.0
    %575 = vmatprep.subr.mxu0 0.0
    %576 = vmatpush1.msra.mxu0 0.0
    %577 = vmatprep.subr.mxu0 0.0
    %578 = vmatpush1.msra.mxu0 0.0
    %579 = vmatprep.subr.mxu0 0.0
    %580 = vmatpush1.msra.mxu0 0.0
    %581 = vmatprep.mubr.f32.mxu0 0.0
    %582 = vmatmul.mubr.f32.gmra.mrb[0].mxu0 %v227
    %v583 = vpop.f32.mrb[0].mxu0
    %v584 = vadd.f32 %v514, %v583
    %v585 = vpop.f32.mrb[0].mxu0
    %586 = vdwg.mxu0
    %v587 = vrsqrt.pop %v584
    %v588 = vld [vmem:[#allocation4] sm:$0xff]
    %v589 = vld [vmem:[#allocation4 + $0x8] sm:$0xff]
    %v590 = vld [vmem:[#allocation4 + $0x10] sm:$0xff]
    %v591 = vld [vmem:[#allocation4 + $0x18] sm:$0xff]
    %v592 = vld [vmem:[#allocation4 + $0x20] sm:$0xff]
    %v593 = vld [vmem:[#allocation4 + $0x28] sm:$0xff]
    %v594 = vld [vmem:[#allocation4 + $0x30] sm:$0xff]
    %v595 = vld [vmem:[#allocation4 + $0x38] sm:$0xff]
    %v596 = vld [vmem:[#allocation4 + $0x40] sm:$0xff]
    %v597 = vld [vmem:[#allocation4 + $0x48] sm:$0xff]
    %v598 = vld [vmem:[#allocation4 + $0x50] sm:$0xff]
    %v599 = vld [vmem:[#allocation4 + $0x58] sm:$0xff]
    %v600 = vld [vmem:[#allocation4 + $0x60] sm:$0xff]
    %v601 = vld [vmem:[#allocation4 + $0x68] sm:$0xff]
    %v602 = vld [vmem:[#allocation4 + $0x70] sm:$0xff]
    %v603 = vld [vmem:[#allocation4 + $0x78] sm:$0xff]
    %v604 = vld [vmem:[#allocation4 + $0x80] sm:$0xff]
    %v605 = vld [vmem:[#allocation4 + $0x88] sm:$0xff]
    %v606 = vld [vmem:[#allocation4 + $0x90] sm:$0xff]
    %v607 = vld [vmem:[#allocation4 + $0x98] sm:$0xff]
    %v608 = vld [vmem:[#allocation4 + $0xa0] sm:$0xff]
    %v609 = vld [vmem:[#allocation4 + $0xa8] sm:$0xff]
    %v610 = vld [vmem:[#allocation4 + $0xb0] sm:$0xff]
    %v611 = vld [vmem:[#allocation4 + $0xb8] sm:$0xff]
    %v612 = vld [vmem:[#allocation4 + $0xc0] sm:$0xff]
    %v613 = vld [vmem:[#allocation4 + $0xc8] sm:$0xff]
    %v614 = vld [vmem:[#allocation4 + $0xd0] sm:$0xff]
    %v615 = vld [vmem:[#allocation4 + $0xd8] sm:$0xff]
    %v616 = vld [vmem:[#allocation4 + $0xe0] sm:$0xff]
    %v617 = vld [vmem:[#allocation4 + $0xe8] sm:$0xff]
    %v618 = vld [vmem:[#allocation4 + $0xf0] sm:$0xff]
    %v619 = vld [vmem:[#allocation4 + $0xf8] sm:$0xff]
    %v620 = vld [vmem:[#allocation4 + $0x100] sm:$0xff]
    %v621 = vld [vmem:[#allocation4 + $0x108] sm:$0xff]
    %v622 = vld [vmem:[#allocation4 + $0x110] sm:$0xff]
    %v623 = vld [vmem:[#allocation4 + $0x118] sm:$0xff]
    %v624 = vld [vmem:[#allocation4 + $0x120] sm:$0xff]
    %v625 = vld [vmem:[#allocation4 + $0x128] sm:$0xff]
    %v626 = vld [vmem:[#allocation4 + $0x130] sm:$0xff]
    %v627 = vld [vmem:[#allocation4 + $0x138] sm:$0xff]
    %v628 = vld [vmem:[#allocation4 + $0x140] sm:$0xff]
    %v629 = vld [vmem:[#allocation4 + $0x148] sm:$0xff]
    %v630 = vld [vmem:[#allocation4 + $0x150] sm:$0xff]
    %v631 = vld [vmem:[#allocation4 + $0x158] sm:$0xff]
    %v632 = vld [vmem:[#allocation4 + $0x160] sm:$0xff]
    %v633 = vld [vmem:[#allocation4 + $0x168] sm:$0xff]
    %v634 = vld [vmem:[#allocation4 + $0x170] sm:$0xff]
    %v635 = vld [vmem:[#allocation4 + $0x178] sm:$0xff]
    %v636 = vld [vmem:[#allocation4 + $0x180] sm:$0xff]
    %v637 = vld [vmem:[#allocation4 + $0x188] sm:$0xff]
    %v638 = vld [vmem:[#allocation4 + $0x190] sm:$0xff]
    %v639 = vld [vmem:[#allocation4 + $0x198] sm:$0xff]
    %v640 = vld [vmem:[#allocation4 + $0x1a0] sm:$0xff]
    %v641 = vld [vmem:[#allocation4 + $0x1a8] sm:$0xff]
    %v642 = vld [vmem:[#allocation4 + $0x1b0] sm:$0xff]
    %v643 = vld [vmem:[#allocation4 + $0x1b8] sm:$0xff]
    %v644 = vld [vmem:[#allocation4 + $0x1c0] sm:$0xff]
    %v645 = vld [vmem:[#allocation4 + $0x1c8] sm:$0xff]
    %v646 = vld [vmem:[#allocation4 + $0x1d0] sm:$0xff]
    %v647 = vld [vmem:[#allocation4 + $0x1d8] sm:$0xff]
    %v648 = vld [vmem:[#allocation4 + $0x1e0] sm:$0xff]
    %v649 = vld [vmem:[#allocation4 + $0x1e8] sm:$0xff]
    %v650 = vld [vmem:[#allocation4 + $0x1f0] sm:$0xff]
    %v651 = vld [vmem:[#allocation4 + $0x1f8] sm:$0xff]
    %v652 = vld [vmem:[#allocation4 + $0x200] sm:$0xff]
    %v653 = vld [vmem:[#allocation4 + $0x208] sm:$0xff]
    %v654 = vld [vmem:[#allocation4 + $0x210] sm:$0xff]
    %v655 = vld [vmem:[#allocation4 + $0x218] sm:$0xff]
    %v656 = vld [vmem:[#allocation4 + $0x220] sm:$0xff]
    %v657 = vld [vmem:[#allocation4 + $0x228] sm:$0xff]
    %v658 = vld [vmem:[#allocation4 + $0x230] sm:$0xff]
    %v659 = vld [vmem:[#allocation4 + $0x238] sm:$0xff]
    %v660 = vld [vmem:[#allocation4 + $0x240] sm:$0xff]
    %v661 = vld [vmem:[#allocation4 + $0x248] sm:$0xff]
    %v662 = vld [vmem:[#allocation4 + $0x250] sm:$0xff]
    %v663 = vld [vmem:[#allocation4 + $0x258] sm:$0xff]
    %v664 = vld [vmem:[#allocation4 + $0x260] sm:$0xff]
    %v665 = vld [vmem:[#allocation4 + $0x268] sm:$0xff]
    %v666 = vld [vmem:[#allocation4 + $0x270] sm:$0xff]
    %v667 = vld [vmem:[#allocation4 + $0x278] sm:$0xff]
    %v668 = vld [vmem:[#allocation4 + $0x280] sm:$0xff]
    %v669 = vld [vmem:[#allocation4 + $0x288] sm:$0xff]
    %v670 = vld [vmem:[#allocation4 + $0x290] sm:$0xff]
    %v671 = vld [vmem:[#allocation4 + $0x298] sm:$0xff]
    %v672 = vld [vmem:[#allocation4 + $0x2a0] sm:$0xff]
    %v673 = vld [vmem:[#allocation4 + $0x2a8] sm:$0xff]
    %v674 = vld [vmem:[#allocation4 + $0x2b0] sm:$0xff]
    %v675 = vld [vmem:[#allocation4 + $0x2b8] sm:$0xff]
    %v676 = vld [vmem:[#allocation4 + $0x2c0] sm:$0xff]
    %v677 = vld [vmem:[#allocation4 + $0x2c8] sm:$0xff]
    %v678 = vld [vmem:[#allocation4 + $0x2d0] sm:$0xff]
    %v679 = vld [vmem:[#allocation4 + $0x2d8] sm:$0xff]
    %v680 = vld [vmem:[#allocation4 + $0x2e0] sm:$0xff]
    %v681 = vld [vmem:[#allocation4 + $0x2e8] sm:$0xff]
    %v682 = vld [vmem:[#allocation4 + $0x2f0] sm:$0xff]
    %v683 = vld [vmem:[#allocation4 + $0x2f8] sm:$0xff]
    %v684 = vld [vmem:[#allocation4 + $0x300] sm:$0xff]
    %v685 = vld [vmem:[#allocation4 + $0x308] sm:$0xff]
    %v686 = vld [vmem:[#allocation4 + $0x310] sm:$0xff]
    %v687 = vld [vmem:[#allocation4 + $0x318] sm:$0xff]
    %v688 = vld [vmem:[#allocation4 + $0x320] sm:$0xff]
    %v689 = vld [vmem:[#allocation4 + $0x328] sm:$0xff]
    %v690 = vld [vmem:[#allocation4 + $0x330] sm:$0xff]
    %v691 = vld [vmem:[#allocation4 + $0x338] sm:$0xff]
    %v692 = vld [vmem:[#allocation4 + $0x340] sm:$0xff]
    %v693 = vld [vmem:[#allocation4 + $0x348] sm:$0xff]
    %v694 = vld [vmem:[#allocation4 + $0x350] sm:$0xff]
    %v695 = vld [vmem:[#allocation4 + $0x358] sm:$0xff]
    %v696 = vld [vmem:[#allocation4 + $0x360] sm:$0xff]
    %v697 = vld [vmem:[#allocation4 + $0x368] sm:$0xff]
    %v698 = vld [vmem:[#allocation4 + $0x370] sm:$0xff]
    %v699 = vld [vmem:[#allocation4 + $0x378] sm:$0xff]
    %v700 = vld [vmem:[#allocation4 + $0x380] sm:$0xff]
    %v701 = vld [vmem:[#allocation4 + $0x388] sm:$0xff]
    %v702 = vld [vmem:[#allocation4 + $0x390] sm:$0xff]
    %v703 = vld [vmem:[#allocation4 + $0x398] sm:$0xff]
    %v704 = vld [vmem:[#allocation4 + $0x3a0] sm:$0xff]
    %v705 = vld [vmem:[#allocation4 + $0x3a8] sm:$0xff]
    %v706 = vld [vmem:[#allocation4 + $0x3b0] sm:$0xff]
    %v707 = vld [vmem:[#allocation4 + $0x3b8] sm:$0xff]
    %v708 = vld [vmem:[#allocation4 + $0x3c0] sm:$0xff]
    %v709 = vld [vmem:[#allocation4 + $0x3c8] sm:$0xff]
    %v710 = vld [vmem:[#allocation4 + $0x3d0] sm:$0xff]
    %v711 = vld [vmem:[#allocation4 + $0x3d8] sm:$0xff]
    %v712 = vld [vmem:[#allocation4 + $0x3e0] sm:$0xff]
    %v713 = vld [vmem:[#allocation4 + $0x3e8] sm:$0xff]
    %v714 = vld [vmem:[#allocation4 + $0x3f0] sm:$0xff]
    %v715 = vld [vmem:[#allocation4 + $0x3f8] sm:$0xff]
    %v716 = vld [vmem:[#allocation4 + $0x400] sm:$0xff]
    %v717 = vld [vmem:[#allocation4 + $0x408] sm:$0xff]
    %v718 = vld [vmem:[#allocation4 + $0x410] sm:$0xff]
    %v719 = vld [vmem:[#allocation4 + $0x418] sm:$0xff]
    %v720 = vld [vmem:[#allocation4 + $0x420] sm:$0xff]
    %v721 = vld [vmem:[#allocation4 + $0x428] sm:$0xff]
    %v722 = vld [vmem:[#allocation4 + $0x430] sm:$0xff]
    %v723 = vld [vmem:[#allocation4 + $0x438] sm:$0xff]
    %v724 = vld [vmem:[#allocation4 + $0x440] sm:$0xff]
    %v725 = vld [vmem:[#allocation4 + $0x448] sm:$0xff]
    %v726 = vld [vmem:[#allocation4 + $0x450] sm:$0xff]
    %v727 = vld [vmem:[#allocation4 + $0x458] sm:$0xff]
    %v728 = vld [vmem:[#allocation4 + $0x460] sm:$0xff]
    %v729 = vld [vmem:[#allocation4 + $0x468] sm:$0xff]
    %v730 = vld [vmem:[#allocation4 + $0x470] sm:$0xff]
    %v731 = vld [vmem:[#allocation4 + $0x478] sm:$0xff]
    %732 = vmatprep.subr.mxu0 %v589
    %733 = vmatpush1.msra.mxu0 %v588
    %734 = vmatprep.subr.mxu0 %v598
    %735 = vmatpush1.msra.mxu0 %v597
    %736 = vmatprep.subr.mxu0 %v607
    %737 = vmatpush1.msra.mxu0 %v606
    %738 = vmatprep.subr.mxu0 %v616
    %739 = vmatpush1.msra.mxu0 %v615
    %740 = vmatprep.subr.mxu0 %v625
    %741 = vmatpush1.msra.mxu0 %v624
    %742 = vmatprep.subr.mxu0 %v634
    %743 = vmatpush1.msra.mxu0 %v633
    %744 = vmatprep.subr.mxu0 %v643
    %745 = vmatpush1.msra.mxu0 %v642
    %746 = vmatprep.subr.mxu0 %v652
    %747 = vmatpush1.msra.mxu0 %v651
    %748 = vmatprep.subr.mxu0 %v661
    %749 = vmatpush1.msra.mxu0 %v660
    %750 = vmatprep.subr.mxu0 %v670
    %751 = vmatpush1.msra.mxu0 %v669
    %752 = vmatprep.subr.mxu0 %v679
    %753 = vmatpush1.msra.mxu0 %v678
    %754 = vmatprep.subr.mxu0 %v688
    %755 = vmatpush1.msra.mxu0 %v687
    %756 = vmatprep.subr.mxu0 %v697
    %757 = vmatpush1.msra.mxu0 %v696
    %758 = vmatprep.subr.mxu0 %v706
    %759 = vmatpush1.msra.mxu0 %v705
    %760 = vmatprep.subr.mxu0 %v715
    %761 = vmatpush1.msra.mxu0 %v714
    %762 = vmatprep.subr.mxu0 %v724
    %763 = vmatpush1.msra.mxu0 %v723
    %764 = vmatprep.subr.mxu0 0.0
    %765 = vmatpush1.msra.mxu0 0.0
    %766 = vmatprep.subr.mxu0 0.0
    %767 = vmatpush1.msra.mxu0 0.0
    %768 = vmatprep.subr.mxu0 0.0
    %769 = vmatpush1.msra.mxu0 0.0
    %770 = vmatprep.subr.mxu0 0.0
    %771 = vmatpush1.msra.mxu0 0.0
    %772 = vmatprep.subr.mxu0 0.0
    %773 = vmatpush1.msra.mxu0 0.0
    %774 = vmatprep.subr.mxu0 0.0
    %775 = vmatpush1.msra.mxu0 0.0
    %776 = vmatprep.subr.mxu0 0.0
    %777 = vmatpush1.msra.mxu0 0.0
    %778 = vmatprep.subr.mxu0 0.0
    %779 = vmatpush1.msra.mxu0 0.0
    %780 = vmatprep.subr.mxu0 0.0
    %781 = vmatpush1.msra.mxu0 0.0
    %782 = vmatprep.subr.mxu0 0.0
    %783 = vmatpush1.msra.mxu0 0.0
    %784 = vmatprep.subr.mxu0 0.0
    %785 = vmatpush1.msra.mxu0 0.0
    %786 = vmatprep.subr.mxu0 0.0
    %787 = vmatpush1.msra.mxu0 0.0
    %788 = vmatprep.subr.mxu0 0.0
    %789 = vmatpush1.msra.mxu0 0.0
    %790 = vmatprep.subr.mxu0 0.0
    %791 = vmatpush1.msra.mxu0 0.0
    %792 = vmatprep.subr.mxu0 0.0
    %793 = vmatpush1.msra.mxu0 0.0
    %794 = vmatprep.subr.mxu0 0.0
    %795 = vmatpush1.msra.mxu0 0.0
    %796 = vmatprep.mubr.f32.mxu0 0.0
    %797 = vmatmul.mubr.f32.gmra.mrb[0].mxu0 %v587
    %v798 = vpop.f32.mrb[0].mxu0
    %v799 = vadd.f32 0.0, %v798
    %v800 = vpop.f32.mrb[0].mxu0
    %v801 = vadd.f32 0.0, %v800
    %802 = vdwg.mxu0
    %803 = vmatprep.subr.mxu0 %v591
    %804 = vmatpush1.msra.mxu0 %v590
    %805 = vmatprep.subr.mxu0 %v600
    %806 = vmatpush1.msra.mxu0 %v599
    %807 = vmatprep.subr.mxu0 %v609
    %808 = vmatpush1.msra.mxu0 %v608
    %809 = vmatprep.subr.mxu0 %v618
    %810 = vmatpush1.msra.mxu0 %v617
    %811 = vmatprep.subr.mxu0 %v627
    %812 = vmatpush1.msra.mxu0 %v626
    %813 = vmatprep.subr.mxu0 %v636
    %814 = vmatpush1.msra.mxu0 %v635
    %815 = vmatprep.subr.mxu0 %v645
    %816 = vmatpush1.msra.mxu0 %v644
    %817 = vmatprep.subr.mxu0 %v654
    %818 = vmatpush1.msra.mxu0 %v653
    %819 = vmatprep.subr.mxu0 %v663
    %820 = vmatpush1.msra.mxu0 %v662
    %821 = vmatprep.subr.mxu0 %v672
    %822 = vmatpush1.msra.mxu0 %v671
    %823 = vmatprep.subr.mxu0 %v681
    %824 = vmatpush1.msra.mxu0 %v680
    %825 = vmatprep.subr.mxu0 %v690
    %826 = vmatpush1.msra.mxu0 %v689
    %827 = vmatprep.subr.mxu0 %v699
    %828 = vmatpush1.msra.mxu0 %v698
    %829 = vmatprep.subr.mxu0 %v708
    %830 = vmatpush1.msra.mxu0 %v707
    %831 = vmatprep.subr.mxu0 %v717
    %832 = vmatpush1.msra.mxu0 %v716
    %833 = vmatprep.subr.mxu0 %v726
    %834 = vmatpush1.msra.mxu0 %v725
    %835 = vmatprep.subr.mxu0 0.0
    %836 = vmatpush1.msra.mxu0 0.0
    %837 = vmatprep.subr.mxu0 0.0
    %838 = vmatpush1.msra.mxu0 0.0
    %839 = vmatprep.subr.mxu0 0.0
    %840 = vmatpush1.msra.mxu0 0.0
    %841 = vmatprep.subr.mxu0 0.0
    %842 = vmatpush1.msra.mxu0 0.0
    %843 = vmatprep.subr.mxu0 0.0
    %844 = vmatpush1.msra.mxu0 0.0
    %845 = vmatprep.subr.mxu0 0.0
    %846 = vmatpush1.msra.mxu0 0.0
    %847 = vmatprep.subr.mxu0 0.0
    %848 = vmatpush1.msra.mxu0 0.0
    %849 = vmatprep.subr.mxu0 0.0
    %850 = vmatpush1.msra.mxu0 0.0
    %851 = vmatprep.subr.mxu0 0.0
    %852 = vmatpush1.msra.mxu0 0.0
    %853 = vmatprep.subr.mxu0 0.0
    %854 = vmatpush1.msra.mxu0 0.0
    %855 = vmatprep.subr.mxu0 0.0
    %856 = vmatpush1.msra.mxu0 0.0
    %857 = vmatprep.subr.mxu0 0.0
    %858 = vmatpush1.msra.mxu0 0.0
    %859 = vmatprep.subr.mxu0 0.0
    %860 = vmatpush1.msra.mxu0 0.0
    %861 = vmatprep.subr.mxu0 0.0
    %862 = vmatpush1.msra.mxu0 0.0
    %863 = vmatprep.subr.mxu0 0.0
    %864 = vmatpush1.msra.mxu0 0.0
    %865 = vmatprep.subr.mxu0 0.0
    %866 = vmatpush1.msra.mxu0 0.0
    %867 = vmatprep.mubr.f32.mxu0 0.0
    %868 = vmatmul.mubr.f32.gmra.mrb[0].mxu0 %v587
    %v869 = vpop.f32.mrb[0].mxu0
    %v870 = vadd.f32 0.0, %v869
    %v871 = vpop.f32.mrb[0].mxu0
    %v872 = vadd.f32 0.0, %v871
    %873 = vdwg.mxu0
    %874 = vmatprep.subr.mxu0 %v593
    %875 = vmatpush1.msra.mxu0 %v592
    %876 = vmatprep.subr.mxu0 %v602
    %877 = vmatpush1.msra.mxu0 %v601
    %878 = vmatprep.subr.mxu0 %v611
    %879 = vmatpush1.msra.mxu0 %v610
    %880 = vmatprep.subr.mxu0 %v620
    %881 = vmatpush1.msra.mxu0 %v619
    %882 = vmatprep.subr.mxu0 %v629
    %883 = vmatpush1.msra.mxu0 %v628
    %884 = vmatprep.subr.mxu0 %v638
    %885 = vmatpush1.msra.mxu0 %v637
    %886 = vmatprep.subr.mxu0 %v647
    %887 = vmatpush1.msra.mxu0 %v646
    %888 = vmatprep.subr.mxu0 %v656
    %889 = vmatpush1.msra.mxu0 %v655
    %890 = vmatprep.subr.mxu0 %v665
    %891 = vmatpush1.msra.mxu0 %v664
    %892 = vmatprep.subr.mxu0 %v674
    %893 = vmatpush1.msra.mxu0 %v673
    %894 = vmatprep.subr.mxu0 %v683
    %895 = vmatpush1.msra.mxu0 %v682
    %896 = vmatprep.subr.mxu0 %v692
    %897 = vmatpush1.msra.mxu0 %v691
    %898 = vmatprep.subr.mxu0 %v701
    %899 = vmatpush1.msra.mxu0 %v700
    %900 = vmatprep.subr.mxu0 %v710
    %901 = vmatpush1.msra.mxu0 %v709
    %902 = vmatprep.subr.mxu0 %v719
    %903 = vmatpush1.msra.mxu0 %v718
    %904 = vmatprep.subr.mxu0 %v728
    %905 = vmatpush1.msra.mxu0 %v727
    %906 = vmatprep.subr.mxu0 0.0
    %907 = vmatpush1.msra.mxu0 0.0
    %908 = vmatprep.subr.mxu0 0.0
    %909 = vmatpush1.msra.mxu0 0.0
    %910 = vmatprep.subr.mxu0 0.0
    %911 = vmatpush1.msra.mxu0 0.0
    %912 = vmatprep.subr.mxu0 0.0
    %913 = vmatpush1.msra.mxu0 0.0
    %914 = vmatprep.subr.mxu0 0.0
    %915 = vmatpush1.msra.mxu0 0.0
    %916 = vmatprep.subr.mxu0 0.0
    %917 = vmatpush1.msra.mxu0 0.0
    %918 = vmatprep.subr.mxu0 0.0
    %919 = vmatpush1.msra.mxu0 0.0
    %920 = vmatprep.subr.mxu0 0.0
    %921 = vmatpush1.msra.mxu0 0.0
    %922 = vmatprep.subr.mxu0 0.0
    %923 = vmatpush1.msra.mxu0 0.0
    %924 = vmatprep.subr.mxu0 0.0
    %925 = vmatpush1.msra.mxu0 0.0
    %926 = vmatprep.subr.mxu0 0.0
    %927 = vmatpush1.msra.mxu0 0.0
    %928 = vmatprep.subr.mxu0 0.0
    %929 = vmatpush1.msra.mxu0 0.0
    %930 = vmatprep.subr.mxu0 0.0
    %931 = vmatpush1.msra.mxu0 0.0
    %932 = vmatprep.subr.mxu0 0.0
    %933 = vmatpush1.msra.mxu0 0.0
    %934 = vmatprep.subr.mxu0 0.0
    %935 = vmatpush1.msra.mxu0 0.0
    %936 = vmatprep.subr.mxu0 0.0
    %937 = vmatpush1.msra.mxu0 0.0
    %938 = vmatprep.mubr.f32.mxu0 0.0
    %939 = vmatmul.mubr.f32.gmra.mrb[0].mxu0 %v587
    %v940 = vpop.f32.mrb[0].mxu0
    %v941 = vadd.f32 0.0, %v940
    %v942 = vpop.f32.mrb[0].mxu0
    %v943 = vadd.f32 0.0, %v942
    %944 = vdwg.mxu0
    %945 = vmatprep.subr.mxu0 %v595
    %946 = vmatpush1.msra.mxu0 %v594
    %947 = vmatprep.subr.mxu0 %v604
    %948 = vmatpush1.msra.mxu0 %v603
    %949 = vmatprep.subr.mxu0 %v613
    %950 = vmatpush1.msra.mxu0 %v612
    %951 = vmatprep.subr.mxu0 %v622
    %952 = vmatpush1.msra.mxu0 %v621
    %953 = vmatprep.subr.mxu0 %v631
    %954 = vmatpush1.msra.mxu0 %v630
    %955 = vmatprep.subr.mxu0 %v640
    %956 = vmatpush1.msra.mxu0 %v639
    %957 = vmatprep.subr.mxu0 %v649
    %958 = vmatpush1.msra.mxu0 %v648
    %959 = vmatprep.subr.mxu0 %v658
    %960 = vmatpush1.msra.mxu0 %v657
    %961 = vmatprep.subr.mxu0 %v667
    %962 = vmatpush1.msra.mxu0 %v666
    %963 = vmatprep.subr.mxu0 %v676
    %964 = vmatpush1.msra.mxu0 %v675
    %965 = vmatprep.subr.mxu0 %v685
    %966 = vmatpush1.msra.mxu0 %v684
    %967 = vmatprep.subr.mxu0 %v694
    %968 = vmatpush1.msra.mxu0 %v693
    %969 = vmatprep.subr.mxu0 %v703
    %970 = vmatpush1.msra.mxu0 %v702
    %971 = vmatprep.subr.mxu0 %v712
    %972 = vmatpush1.msra.mxu0 %v711
    %973 = vmatprep.subr.mxu0 %v721
    %974 = vmatpush1.msra.mxu0 %v720
    %975 = vmatprep.subr.mxu0 %v730
    %976 = vmatpush1.msra.mxu0 %v729
    %977 = vmatprep.subr.mxu0 0.0
    %978 = vmatpush1.msra.mxu0 0.0
    %979 = vmatprep.subr.mxu0 0.0
    %980 = vmatpush1.msra.mxu0 0.0
    %981 = vmatprep.subr.mxu0 0.0
    %982 = vmatpush1.msra.mxu0 0.0
    %983 = vmatprep.subr.mxu0 0.0
    %984 = vmatpush1.msra.mxu0 0.0
    %985 = vmatprep.subr.mxu0 0.0
    %986 = vmatpush1.msra.mxu0 0.0
    %987 = vmatprep.subr.mxu0 0.0
    %988 = vmatpush1.msra.mxu0 0.0
    %989 = vmatprep.subr.mxu0 0.0
    %990 = vmatpush1.msra.mxu0 0.0
    %991 = vmatprep.subr.mxu0 0.0
    %992 = vmatpush1.msra.mxu0 0.0
    %993 = vmatprep.subr.mxu0 0.0
    %994 = vmatpush1.msra.mxu0 0.0
    %995 = vmatprep.subr.mxu0 0.0
    %996 = vmatpush1.msra.mxu0 0.0
    %997 = vmatprep.subr.mxu0 0.0
    %998 = vmatpush1.msra.mxu0 0.0
    %999 = vmatprep.subr.mxu0 0.0
    %1000 = vmatpush1.msra.mxu0 0.0
    %1001 = vmatprep.subr.mxu0 0.0
    %1002 = vmatpush1.msra.mxu0 0.0
    %1003 = vmatprep.subr.mxu0 0.0
    %1004 = vmatpush1.msra.mxu0 0.0
    %1005 = vmatprep.subr.mxu0 0.0
    %1006 = vmatpush1.msra.mxu0 0.0
    %1007 = vmatprep.subr.mxu0 0.0
    %1008 = vmatpush1.msra.mxu0 0.0
    %1009 = vmatprep.mubr.f32.mxu0 0.0
    %1010 = vmatmul.mubr.f32.gmra.mrb[0].mxu0 %v587
    %v1011 = vpop.f32.mrb[0].mxu0
    %v1012 = vadd.f32 0.0, %v1011
    %v1013 = vpop.f32.mrb[0].mxu0
    %v1014 = vadd.f32 0.0, %v1013
    %1015 = vdwg.mxu0
    %1016 = vmatprep.subr.mxu0 0.0
    %1017 = vmatpush1.msra.mxu0 %v596
    %1018 = vmatprep.subr.mxu0 0.0
    %1019 = vmatpush1.msra.mxu0 %v605
    %1020 = vmatprep.subr.mxu0 0.0
    %1021 = vmatpush1.msra.mxu0 %v614
    %1022 = vmatprep.subr.mxu0 0.0
    %1023 = vmatpush1.msra.mxu0 %v623
    %1024 = vmatprep.subr.mxu0 0.0
    %1025 = vmatpush1.msra.mxu0 %v632
    %1026 = vmatprep.subr.mxu0 0.0
    %1027 = vmatpush1.msra.mxu0 %v641
    %1028 = vmatprep.subr.mxu0 0.0
    %1029 = vmatpush1.msra.mxu0 %v650
    %1030 = vmatprep.subr.mxu0 0.0
    %1031 = vmatpush1.msra.mxu0 %v659
    %1032 = vmatprep.subr.mxu0 0.0
    %1033 = vmatpush1.msra.mxu0 %v668
    %1034 = vmatprep.subr.mxu0 0.0
    %1035 = vmatpush1.msra.mxu0 %v677
    %1036 = vmatprep.subr.mxu0 0.0
    %1037 = vmatpush1.msra.mxu0 %v686
    %1038 = vmatprep.subr.mxu0 0.0
    %1039 = vmatpush1.msra.mxu0 %v695
    %1040 = vmatprep.subr.mxu0 0.0
    %1041 = vmatpush1.msra.mxu0 %v704
    %1042 = vmatprep.subr.mxu0 0.0
    %1043 = vmatpush1.msra.mxu0 %v713
    %1044 = vmatprep.subr.mxu0 0.0
    %1045 = vmatpush1.msra.mxu0 %v722
    %1046 = vmatprep.subr.mxu0 0.0
    %1047 = vmatpush1.msra.mxu0 %v731
    %1048 = vmatprep.subr.mxu0 0.0
    %1049 = vmatpush1.msra.mxu0 0.0
    %1050 = vmatprep.subr.mxu0 0.0
    %1051 = vmatpush1.msra.mxu0 0.0
    %1052 = vmatprep.subr.mxu0 0.0
    %1053 = vmatpush1.msra.mxu0 0.0
    %1054 = vmatprep.subr.mxu0 0.0
    %1055 = vmatpush1.msra.mxu0 0.0
    %1056 = vmatprep.subr.mxu0 0.0
    %1057 = vmatpush1.msra.mxu0 0.0
    %1058 = vmatprep.subr.mxu0 0.0
    %1059 = vmatpush1.msra.mxu0 0.0
    %1060 = vmatprep.subr.mxu0 0.0
    %1061 = vmatpush1.msra.mxu0 0.0
    %1062 = vmatprep.subr.mxu0 0.0
    %1063 = vmatpush1.msra.mxu0 0.0
    %1064 = vmatprep.subr.mxu0 0.0
    %1065 = vmatpush1.msra.mxu0 0.0
    %1066 = vmatprep.subr.mxu0 0.0
    %1067 = vmatpush1.msra.mxu0 0.0
    %1068 = vmatprep.subr.mxu0 0.0
    %1069 = vmatpush1.msra.mxu0 0.0
    %1070 = vmatprep.subr.mxu0 0.0
    %1071 = vmatpush1.msra.mxu0 0.0
    %1072 = vmatprep.subr.mxu0 0.0
    %1073 = vmatpush1.msra.mxu0 0.0
    %1074 = vmatprep.subr.mxu0 0.0
    %1075 = vmatpush1.msra.mxu0 0.0
    %1076 = vmatprep.subr.mxu0 0.0
    %1077 = vmatpush1.msra.mxu0 0.0
    %1078 = vmatprep.subr.mxu0 0.0
    %1079 = vmatpush1.msra.mxu0 0.0
    %1080 = vmatprep.mubr.f32.mxu0 0.0
    %1081 = vmatmul.mubr.f32.gmra.mrb[0].mxu0 %v587
    %v1082 = vpop.f32.mrb[0].mxu0
    %v1083 = vadd.f32 0.0, %v1082
    %v1084 = vpop.f32.mrb[0].mxu0
    %1085 = vdwg.mxu0
    %v1095 = vcombine.low %v799, %v801
    %v1096 = vcombine.low %v870, %v872
    %v1097 = vcombine.low %v941, %v943
    %v1098 = vcombine.low %v1012, %v1014
    %v1100 = vunpack.c.l.s4 1966171168
    %v1101 = vunpack.c.0.s8 %v1100
    %v1102 = vlaneseq
    %v1103 = vshrl.u32 %v1102, 7
    %v1104 = vsub.s32 %v1101, %v1103
    %v1105 = vrot.slane %v1095, %v1104
    %v1107 = vunpack.c.l.s4 1966171168
    %v1108 = vunpack.c.0.s8 %v1107
    %v1109 = vlaneseq
    %v1110 = vshrl.u32 %v1109, 7
    %v1111 = vsub.s32 %v1108, %v1110
    %v1112 = vrot.slane %v1096, %v1111
    %v1114 = vunpack.c.l.s4 1966171168
    %v1115 = vunpack.c.0.s8 %v1114
    %v1116 = vlaneseq
    %v1117 = vshrl.u32 %v1116, 7
    %v1118 = vsub.s32 %v1115, %v1117
    %v1119 = vrot.slane %v1097, %v1118
    %v1121 = vunpack.c.l.s4 1966171168
    %v1122 = vunpack.c.0.s8 %v1121
    %v1123 = vlaneseq
    %v1124 = vshrl.u32 %v1123, 7
    %v1125 = vsub.s32 %v1122, %v1124
    %v1126 = vrot.slane %v1098, %v1125
    %v1127 = vcombine.low %v1105, %v1112
    %v1128 = vcombine.low %v1119, %v1126
    %v1130 = vunpack.c.l.s4 1966171168
    %v1131 = vunpack.c.0.s8 %v1130
    %v1132 = vlaneseq
    %v1133 = vshrl.u32 %v1132, 7
    %v1134 = vsub.s32 %v1131, %v1133
    %v1135 = vrot.slane %v1127, %v1134
    %v1137 = vunpack.c.l.s4 1966171168
    %v1138 = vunpack.c.0.s8 %v1137
    %v1139 = vlaneseq
    %v1140 = vshrl.u32 %v1139, 7
    %v1141 = vsub.s32 %v1138, %v1140
    %v1142 = vrot.slane %v1128, %v1141
    %v1143 = vcombine.low %v1135, %v1142
    %v1145 = vunpack.c.l.s4 1966171168
    %v1146 = vunpack.c.0.s8 %v1145
    %v1147 = vlaneseq
    %v1148 = vshrl.u32 %v1147, 7
    %v1149 = vsub.s32 %v1146, %v1148
    %v1150 = vrot.slane %v1083, %v1149
    %v1152 = vunpack.c.l.s4 1966171168
    %v1153 = vunpack.c.0.s8 %v1152
    %v1154 = vlaneseq
    %v1155 = vshrl.u32 %v1154, 7
    %v1156 = vsub.s32 %v1153, %v1155
    %v1157 = vrot.slane %v1150, %v1156
    %v1160 = vmul.f32 %v42, %v1143
    %v1161 = vmul.f32 %v43, %v1157
    %1162 = vst [vmem:[%s3] sm:$0xff] %v1160
    %v1163 = vlaneseq
    %vm1164 = vcmp.ge.s32.totalorder %v1163, 0
    %vm1165 = vcmp.lt.s32.totalorder %v1163, 128
    %vm1166 = vmand %vm1164, %vm1165
    %1167 = vst.msk [vmem:[%s3 + $0x8] sm:$0x1] %vm1166, %v1161
    // Predicated region
    $region22: #{tens_sigmoid.1} parent=1 // pred_check
      _
    $region23: #{tens_sigmoid.1} parent=1 // pred_check_branch
      %1169 = sbr.rel (0) target = $region25
    $region24: #{tens_sigmoid.1} parent=1 // pred_region
      _
    $region25: #{tens_sigmoid.1} parent=1 // pred_fallthru
      _
    // Predicated region
    $region26: #{tens_sigmoid.1} parent=1 // pred_check
      _
    $region27: #{tens_sigmoid.1} parent=1 // pred_check_branch
      %1171 = sbr.rel (0) target = $region29
    $region28: #{tens_sigmoid.1} parent=1 // pred_region
      _
    $region29: #{tens_sigmoid.1} parent=1 // pred_fallthru
      _
    %1172 = vsyncpa [#allocation3], 1
    %1173 = vsyncpa [#allocation5], 1

</llo_original>
